<compile_context>
chip_gen: v7x
topology: tpu7x:2x2x1
jax: 0.10.0
libtpu: 0.0.40
codegen_flags: <defaults>
</compile_context>

<pallas_src>
import jax
import jax.numpy as jnp
from jax.experimental import pallas as pl
from jax.experimental.pallas import tpu as pltpu


def _make_basic_conv_kernel(Ho, Wo, KH, KW, pad, Cin, Cout):
    HW = Ho * Wo

    def kernel(x_ref, w_ref, bias_ref, o_ref):
        # x_ref   : (1, Cin, L) bf16, L = H*W + 2*pad*(W+1) (flat spatial + halo zeros)
        # w_ref   : (KH*KW, Cout, Cin) bf16  -- per-tap weights, BN scale folded in
        # bias_ref: (Cout, 1) f32            -- folded BN bias
        # o_ref   : (1, Cout, HW) f32        -- lane-dense output tile

        # KW-1 distinct left/right column-validity masks, hoisted out of the kh loop.
        col = jax.lax.broadcasted_iota(jnp.int32, (1, HW), 1) % Wo
        masks = {}
        for kw in range(KW):
            if kw != pad:
                c = col + (kw - pad)
                masks[kw] = jnp.logical_and(c >= 0, c < Wo)

        acc = jnp.zeros((Cout, HW), jnp.float32)
        for kh in range(KH):
            for kw in range(KW):
                d = kh * Wo + kw                            # static lane offset of this tap
                piece = x_ref[0, :, d:d + HW]               # (Cin, HW) bf16 lane slice
                w_tap = w_ref[kh * KW + kw]                 # (Cout, Cin) bf16
                tap = jnp.dot(w_tap, piece,
                              preferred_element_type=jnp.float32)   # (Cout, HW) f32 on MXU
                if kw != pad:
                    # Zero the columns that wrapped across a row boundary.  Masking the
                    # f32 tap output is equivalent to masking `piece` (pixel axis is not
                    # contracted) and keeps the select off the bf16 path.
                    tap = jnp.where(masks[kw], tap, 0.0)
                acc = acc + tap

        y = jnp.maximum(acc + bias_ref[...], 0.0)           # folded BN bias + ReLU
        # NOTE: emitting bf16 here would halve the writeback if downstream accepts it;
        # kept f32 to match the PyTorch module's output dtype.
        o_ref[...] = y.reshape(1, Cout, HW).astype(o_ref.dtype)

    return kernel


def basic_conv_pallas(x_nchw, w_oihw, gamma, beta, run_mean, run_var,
                      *, padding=1, eps=1e-5):
    """BasicConv forward: conv(stride=1, dilation=1, groups=1, bias=False) + BN(eval) + ReLU."""
    N, Cin, H, W = x_nchw.shape
    Cout, _, KH, KW = w_oihw.shape
    Ho = H + 2 * padding - KH + 1
    Wo = W + 2 * padding - KW + 1
    # The constant-lane-shift trick requires 'same' width padding.
    assert Wo == W and 2 * padding == KW - 1, "kernel assumes 2*padding == kernel_size - 1"
    HWo = Ho * Wo

    # Flat spatial axis with pad*(W+1) halo zeros on each end (top/bottom rows +
    # left/right corner overhang).  No transpose of the activations anywhere.
    halo = padding * (W + 1)
    L = H * W + 2 * halo
    x_flat = jnp.pad(x_nchw.reshape(N, Cin, H * W),
                     ((0, 0), (0, 0), (halo, halo))).astype(jnp.bfloat16)

    # Fold BN (inference) into the conv weights (scale) and a per-channel bias.
    # The per-channel multiply happens in f32 BEFORE the bf16 cast (no double rounding).
    inv = gamma / jnp.sqrt(run_var + eps)
    w_folded = w_oihw.astype(jnp.float32) * inv[:, None, None, None]        # (Cout,Cin,KH,KW)
    w_taps = jnp.transpose(w_folded, (2, 3, 0, 1)).reshape(KH * KW, Cout, Cin)
    w_taps = w_taps.astype(jnp.bfloat16)                                    # (KH*KW,Cout,Cin)
    bias = (beta - run_mean * inv).reshape(Cout, 1).astype(jnp.float32)

    kernel = _make_basic_conv_kernel(Ho, Wo, KH, KW, padding, Cin, Cout)

    out = pl.pallas_call(
        kernel,
        out_shape=jax.ShapeDtypeStruct((N, Cout, HWo), jnp.float32),
        grid_spec=pltpu.PrefetchScalarGridSpec(
            num_scalar_prefetch=0,
            grid=(N,),
            in_specs=[
                pl.BlockSpec((1, Cin, L), lambda n: (n, 0, 0)),
                pl.BlockSpec((KH * KW, Cout, Cin), lambda n: (0, 0, 0)),
                pl.BlockSpec((Cout, 1), lambda n: (0, 0)),
            ],
            out_specs=pl.BlockSpec((1, Cout, HWo), lambda n: (n, 0, 0)),
        ),
        compiler_params=pltpu.CompilerParams(
            dimension_semantics=("parallel",),
            vmem_limit_bytes=32 * 1024 * 1024,
        ),
    )(x_flat, w_taps, bias)

    # (N, Cout, Ho*Wo) -> (N, Cout, Ho, Wo): free reshape, already NCHW.
    return out.reshape(N, Cout, Ho, Wo)


def _reference(x_f32, w_folded_f32, bias, *, padding=1):
    y = jax.lax.conv_general_dilated(
        x_f32, w_folded_f32,
        window_strides=(1, 1), padding=[(padding, padding), (padding, padding)],
        dimension_numbers=("NCHW", "OIHW", "NCHW"),
        precision=jax.lax.Precision.HIGHEST,
    )
    y = y + bias[None, :, None, None]
    return jnp.maximum(y, 0.0)


if __name__ == "__main__":
    key = jax.random.PRNGKey(0)
    k1, k2, k3, k4, k5, k6 = jax.random.split(key, 6)

    # BasicConv(in_planes=4, out_planes=8, kernel_size=3, padding=1)
    N, Cin, H, W = 2, 4, 16, 16
    Cout, KH, KW, padding = 8, 3, 3, 1
    eps = 1e-5

    x = jax.random.normal(k1, (N, Cin, H, W), jnp.float32)
    w = jax.random.normal(k2, (Cout, Cin, KH, KW), jnp.float32) * 0.1
    gamma = 1.0 + 0.1 * jax.random.normal(k3, (Cout,), jnp.float32)
    beta = 0.1 * jax.random.normal(k4, (Cout,), jnp.float32)
    run_mean = 0.1 * jax.random.normal(k5, (Cout,), jnp.float32)
    run_var = jnp.abs(jax.random.normal(k6, (Cout,), jnp.float32)) + 0.5

    out = basic_conv_pallas(x, w, gamma, beta, run_mean, run_var,
                            padding=padding, eps=eps)
    out = jax.block_until_ready(out)
    assert out.shape == (N, Cout, H, W), out.shape

    # Reference applies the exact same bf16 rounding the kernel uses on the HBM path
    # (activations and scale-folded weights shipped as bf16; accumulation/bias in f32).
    inv = gamma / jnp.sqrt(run_var + eps)
    w_folded_bf = (w * inv[:, None, None, None]).astype(jnp.bfloat16).astype(jnp.float32)
    bias = beta - run_mean * inv
    x_bf = x.astype(jnp.bfloat16).astype(jnp.float32)
    ref = _reference(x_bf, w_folded_bf, bias, padding=padding)

    max_err = float(jnp.max(jnp.abs(out - ref)))
    assert jnp.allclose(out, ref, atol=1e-3, rtol=1e-3), max_err

    print("KERNEL_OK")
</pallas_src>

<mosaic_0001>
module attributes {stable_mosaic.version = 11 : i64} {
  func.func @kernel(%arg0: i32, %arg1: memref<1x4x290xbf16, #tpu.memory_space<vmem>>, %arg2: memref<9x8x4xbf16, #tpu.memory_space<vmem>>, %arg3: memref<8x1xf32, #tpu.memory_space<vmem>>, %arg4: memref<1x8x256xf32, #tpu.memory_space<vmem>>) attributes {dimension_semantics = [#tpu.dimension_semantics<parallel>], iteration_bounds = array<i64: 2>, scalar_prefetch = 0 : i64, scratch_operands = 0 : i64, tpu.core_type = #tpu.core_type<tc>, window_params = [{transform_indices = @transform_0, window_bounds = array<i64: 1, 4, 290>}, {pipeline_mode = #tpu.pipeline_mode<synchronous>, transform_indices = @transform_1, window_bounds = array<i64: 9, 8, 4>}, {pipeline_mode = #tpu.pipeline_mode<synchronous>, transform_indices = @transform_2, window_bounds = array<i64: 8, 1>}, {transform_indices = @transform_3, window_bounds = array<i64: 1, 8, 256>}]} {
    %0 = tpu.iota {dimensions = array<i32: 1>} : vector<1x256xi32>
    %c16_i32 = arith.constant 16 : i32
    %c0_i32 = arith.constant 0 : i32
    %1 = arith.cmpi eq, %c16_i32, %c0_i32 : i32
    %c1_i32 = arith.constant 1 : i32
    %2 = arith.select %1, %c1_i32, %c16_i32 : i32
    %3 = vector.broadcast %2 : i32 to vector<1x256xi32>
    %4 = arith.remsi %0, %3 : vector<1x256xi32>
    %c0_i32_0 = arith.constant 0 : i32
    %5 = vector.broadcast %c0_i32_0 : i32 to vector<1x256xi32>
    %6 = arith.cmpi ne, %4, %5 : vector<1x256xi32>
    %c0_i32_1 = arith.constant 0 : i32
    %7 = vector.broadcast %c0_i32_1 : i32 to vector<1x256xi32>
    %8 = arith.cmpi slt, %4, %7 : vector<1x256xi32>
    %c0_i32_2 = arith.constant 0 : i32
    %9 = arith.cmpi slt, %2, %c0_i32_2 : i32
    %10 = vector.broadcast %9 : i1 to vector<1x256xi1>
    %11 = vector.broadcast %10 : vector<1x256xi1> to vector<1x256xi1>
    %12 = arith.xori %8, %11 : vector<1x256xi1>
    %13 = arith.andi %12, %6 : vector<1x256xi1>
    %14 = vector.broadcast %2 : i32 to vector<1x256xi32>
    %15 = arith.addi %4, %14 : vector<1x256xi32>
    %16 = arith.select %13, %15, %4 : vector<1x256xi1>, vector<1x256xi32>
    %c-1_i32 = arith.constant -1 : i32
    %17 = vector.broadcast %c-1_i32 : i32 to vector<1x256xi32>
    %18 = arith.addi %16, %17 : vector<1x256xi32>
    %c0_i32_3 = arith.constant 0 : i32
    %19 = vector.broadcast %c0_i32_3 : i32 to vector<1x256xi32>
    %20 = arith.cmpi sge, %18, %19 : vector<1x256xi32>
    %c16_i32_4 = arith.constant 16 : i32
    %21 = vector.broadcast %c16_i32_4 : i32 to vector<1x256xi32>
    %22 = arith.cmpi slt, %18, %21 : vector<1x256xi32>
    %23 = arith.andi %20, %22 : vector<1x256xi1>
    %c1_i32_5 = arith.constant 1 : i32
    %24 = vector.broadcast %c1_i32_5 : i32 to vector<1x256xi32>
    %25 = arith.addi %16, %24 : vector<1x256xi32>
    %c0_i32_6 = arith.constant 0 : i32
    %26 = vector.broadcast %c0_i32_6 : i32 to vector<1x256xi32>
    %27 = arith.cmpi sge, %25, %26 : vector<1x256xi32>
    %c16_i32_7 = arith.constant 16 : i32
    %28 = vector.broadcast %c16_i32_7 : i32 to vector<1x256xi32>
    %29 = arith.cmpi slt, %25, %28 : vector<1x256xi32>
    %30 = arith.andi %27, %29 : vector<1x256xi1>
    %cst = arith.constant 0.000000e+00 : f32
    %31 = vector.broadcast %cst : f32 to vector<8x256xf32>
    %c0 = arith.constant 0 : index
    %c0_8 = arith.constant 0 : index
    %c0_9 = arith.constant 0 : index
    %32 = vector.load %arg1[%c0, %c0_8, %c0_9] : memref<1x4x290xbf16, #tpu.memory_space<vmem>>, vector<1x4x256xbf16>
    %33 = vector.shape_cast %32 : vector<1x4x256xbf16> to vector<4x256xbf16>
    %c0_10 = arith.constant 0 : index
    %c0_11 = arith.constant 0 : index
    %c0_12 = arith.constant 0 : index
    %34 = vector.load %arg2[%c0_10, %c0_11, %c0_12] : memref<9x8x4xbf16, #tpu.memory_space<vmem>>, vector<1x8x4xbf16>
    %35 = vector.shape_cast %34 : vector<1x8x4xbf16> to vector<8x4xbf16>
    %cst_13 = arith.constant dense<0.000000e+00> : vector<8x256xf32>
    %36 = tpu.matmul %35, %33, %cst_13 {dimension_numbers = #tpu.dot_dimension_numbers<[1], [0], [0], [1], [0, 0, 1, 1], [], []>} : vector<8x4xbf16>, vector<4x256xbf16>, vector<8x256xf32> -> vector<8x256xf32>
    %cst_14 = arith.constant 0.000000e+00 : f32
    %37 = vector.shape_cast %23 : vector<1x256xi1> to vector<1x256xi1>
    %38 = vector.broadcast %37 : vector<1x256xi1> to vector<8x256xi1>
    %39 = vector.broadcast %cst_14 : f32 to vector<8x256xf32>
    %40 = arith.select %38, %36, %39 : vector<8x256xi1>, vector<8x256xf32>
    %41 = arith.addf %31, %40 : vector<8x256xf32>
    %c0_15 = arith.constant 0 : index
    %c0_16 = arith.constant 0 : index
    %c1 = arith.constant 1 : index
    %42 = vector.load %arg1[%c0_15, %c0_16, %c1] : memref<1x4x290xbf16, #tpu.memory_space<vmem>>, vector<1x4x256xbf16>
    %43 = vector.shape_cast %42 : vector<1x4x256xbf16> to vector<4x256xbf16>
    %c1_17 = arith.constant 1 : index
    %c0_18 = arith.constant 0 : index
    %c0_19 = arith.constant 0 : index
    %44 = vector.load %arg2[%c1_17, %c0_18, %c0_19] : memref<9x8x4xbf16, #tpu.memory_space<vmem>>, vector<1x8x4xbf16>
    %45 = vector.shape_cast %44 : vector<1x8x4xbf16> to vector<8x4xbf16>
    %cst_20 = arith.constant dense<0.000000e+00> : vector<8x256xf32>
    %46 = tpu.matmul %45, %43, %cst_20 {dimension_numbers = #tpu.dot_dimension_numbers<[1], [0], [0], [1], [0, 0, 1, 1], [], []>} : vector<8x4xbf16>, vector<4x256xbf16>, vector<8x256xf32> -> vector<8x256xf32>
    %47 = arith.addf %41, %46 : vector<8x256xf32>
    %c0_21 = arith.constant 0 : index
    %c0_22 = arith.constant 0 : index
    %c2 = arith.constant 2 : index
    %48 = vector.load %arg1[%c0_21, %c0_22, %c2] : memref<1x4x290xbf16, #tpu.memory_space<vmem>>, vector<1x4x256xbf16>
    %49 = vector.shape_cast %48 : vector<1x4x256xbf16> to vector<4x256xbf16>
    %c2_23 = arith.constant 2 : index
    %c0_24 = arith.constant 0 : index
    %c0_25 = arith.constant 0 : index
    %50 = vector.load %arg2[%c2_23, %c0_24, %c0_25] : memref<9x8x4xbf16, #tpu.memory_space<vmem>>, vector<1x8x4xbf16>
    %51 = vector.shape_cast %50 : vector<1x8x4xbf16> to vector<8x4xbf16>
    %cst_26 = arith.constant dense<0.000000e+00> : vector<8x256xf32>
    %52 = tpu.matmul %51, %49, %cst_26 {dimension_numbers = #tpu.dot_dimension_numbers<[1], [0], [0], [1], [0, 0, 1, 1], [], []>} : vector<8x4xbf16>, vector<4x256xbf16>, vector<8x256xf32> -> vector<8x256xf32>
    %cst_27 = arith.constant 0.000000e+00 : f32
    %53 = vector.shape_cast %30 : vector<1x256xi1> to vector<1x256xi1>
    %54 = vector.broadcast %53 : vector<1x256xi1> to vector<8x256xi1>
    %55 = vector.broadcast %cst_27 : f32 to vector<8x256xf32>
    %56 = arith.select %54, %52, %55 : vector<8x256xi1>, vector<8x256xf32>
    %57 = arith.addf %47, %56 : vector<8x256xf32>
    %c0_28 = arith.constant 0 : index
    %c0_29 = arith.constant 0 : index
    %c16 = arith.constant 16 : index
    %58 = vector.load %arg1[%c0_28, %c0_29, %c16] : memref<1x4x290xbf16, #tpu.memory_space<vmem>>, vector<1x4x256xbf16>
    %59 = vector.shape_cast %58 : vector<1x4x256xbf16> to vector<4x256xbf16>
    %c3 = arith.constant 3 : index
    %c0_30 = arith.constant 0 : index
    %c0_31 = arith.constant 0 : index
    %60 = vector.load %arg2[%c3, %c0_30, %c0_31] : memref<9x8x4xbf16, #tpu.memory_space<vmem>>, vector<1x8x4xbf16>
    %61 = vector.shape_cast %60 : vector<1x8x4xbf16> to vector<8x4xbf16>
    %cst_32 = arith.constant dense<0.000000e+00> : vector<8x256xf32>
    %62 = tpu.matmul %61, %59, %cst_32 {dimension_numbers = #tpu.dot_dimension_numbers<[1], [0], [0], [1], [0, 0, 1, 1], [], []>} : vector<8x4xbf16>, vector<4x256xbf16>, vector<8x256xf32> -> vector<8x256xf32>
    %cst_33 = arith.constant 0.000000e+00 : f32
    %63 = vector.shape_cast %23 : vector<1x256xi1> to vector<1x256xi1>
    %64 = vector.broadcast %63 : vector<1x256xi1> to vector<8x256xi1>
    %65 = vector.broadcast %cst_33 : f32 to vector<8x256xf32>
    %66 = arith.select %64, %62, %65 : vector<8x256xi1>, vector<8x256xf32>
    %67 = arith.addf %57, %66 : vector<8x256xf32>
    %c0_34 = arith.constant 0 : index
    %c0_35 = arith.constant 0 : index
    %c17 = arith.constant 17 : index
    %68 = vector.load %arg1[%c0_34, %c0_35, %c17] : memref<1x4x290xbf16, #tpu.memory_space<vmem>>, vector<1x4x256xbf16>
    %69 = vector.shape_cast %68 : vector<1x4x256xbf16> to vector<4x256xbf16>
    %c4 = arith.constant 4 : index
    %c0_36 = arith.constant 0 : index
    %c0_37 = arith.constant 0 : index
    %70 = vector.load %arg2[%c4, %c0_36, %c0_37] : memref<9x8x4xbf16, #tpu.memory_space<vmem>>, vector<1x8x4xbf16>
    %71 = vector.shape_cast %70 : vector<1x8x4xbf16> to vector<8x4xbf16>
    %cst_38 = arith.constant dense<0.000000e+00> : vector<8x256xf32>
    %72 = tpu.matmul %71, %69, %cst_38 {dimension_numbers = #tpu.dot_dimension_numbers<[1], [0], [0], [1], [0, 0, 1, 1], [], []>} : vector<8x4xbf16>, vector<4x256xbf16>, vector<8x256xf32> -> vector<8x256xf32>
    %73 = arith.addf %67, %72 : vector<8x256xf32>
    %c0_39 = arith.constant 0 : index
    %c0_40 = arith.constant 0 : index
    %c18 = arith.constant 18 : index
    %74 = vector.load %arg1[%c0_39, %c0_40, %c18] : memref<1x4x290xbf16, #tpu.memory_space<vmem>>, vector<1x4x256xbf16>
    %75 = vector.shape_cast %74 : vector<1x4x256xbf16> to vector<4x256xbf16>
    %c5 = arith.constant 5 : index
    %c0_41 = arith.constant 0 : index
    %c0_42 = arith.constant 0 : index
    %76 = vector.load %arg2[%c5, %c0_41, %c0_42] : memref<9x8x4xbf16, #tpu.memory_space<vmem>>, vector<1x8x4xbf16>
    %77 = vector.shape_cast %76 : vector<1x8x4xbf16> to vector<8x4xbf16>
    %cst_43 = arith.constant dense<0.000000e+00> : vector<8x256xf32>
    %78 = tpu.matmul %77, %75, %cst_43 {dimension_numbers = #tpu.dot_dimension_numbers<[1], [0], [0], [1], [0, 0, 1, 1], [], []>} : vector<8x4xbf16>, vector<4x256xbf16>, vector<8x256xf32> -> vector<8x256xf32>
    %cst_44 = arith.constant 0.000000e+00 : f32
    %79 = vector.shape_cast %30 : vector<1x256xi1> to vector<1x256xi1>
    %80 = vector.broadcast %79 : vector<1x256xi1> to vector<8x256xi1>
    %81 = vector.broadcast %cst_44 : f32 to vector<8x256xf32>
    %82 = arith.select %80, %78, %81 : vector<8x256xi1>, vector<8x256xf32>
    %83 = arith.addf %73, %82 : vector<8x256xf32>
    %c0_45 = arith.constant 0 : index
    %c0_46 = arith.constant 0 : index
    %c32 = arith.constant 32 : index
    %84 = vector.load %arg1[%c0_45, %c0_46, %c32] : memref<1x4x290xbf16, #tpu.memory_space<vmem>>, vector<1x4x256xbf16>
    %85 = vector.shape_cast %84 : vector<1x4x256xbf16> to vector<4x256xbf16>
    %c6 = arith.constant 6 : index
    %c0_47 = arith.constant 0 : index
    %c0_48 = arith.constant 0 : index
    %86 = vector.load %arg2[%c6, %c0_47, %c0_48] : memref<9x8x4xbf16, #tpu.memory_space<vmem>>, vector<1x8x4xbf16>
    %87 = vector.shape_cast %86 : vector<1x8x4xbf16> to vector<8x4xbf16>
    %cst_49 = arith.constant dense<0.000000e+00> : vector<8x256xf32>
    %88 = tpu.matmul %87, %85, %cst_49 {dimension_numbers = #tpu.dot_dimension_numbers<[1], [0], [0], [1], [0, 0, 1, 1], [], []>} : vector<8x4xbf16>, vector<4x256xbf16>, vector<8x256xf32> -> vector<8x256xf32>
    %cst_50 = arith.constant 0.000000e+00 : f32
    %89 = vector.shape_cast %23 : vector<1x256xi1> to vector<1x256xi1>
    %90 = vector.broadcast %89 : vector<1x256xi1> to vector<8x256xi1>
    %91 = vector.broadcast %cst_50 : f32 to vector<8x256xf32>
    %92 = arith.select %90, %88, %91 : vector<8x256xi1>, vector<8x256xf32>
    %93 = arith.addf %83, %92 : vector<8x256xf32>
    %c0_51 = arith.constant 0 : index
    %c0_52 = arith.constant 0 : index
    %c33 = arith.constant 33 : index
    %94 = vector.load %arg1[%c0_51, %c0_52, %c33] : memref<1x4x290xbf16, #tpu.memory_space<vmem>>, vector<1x4x256xbf16>
    %95 = vector.shape_cast %94 : vector<1x4x256xbf16> to vector<4x256xbf16>
    %c7 = arith.constant 7 : index
    %c0_53 = arith.constant 0 : index
    %c0_54 = arith.constant 0 : index
    %96 = vector.load %arg2[%c7, %c0_53, %c0_54] : memref<9x8x4xbf16, #tpu.memory_space<vmem>>, vector<1x8x4xbf16>
    %97 = vector.shape_cast %96 : vector<1x8x4xbf16> to vector<8x4xbf16>
    %cst_55 = arith.constant dense<0.000000e+00> : vector<8x256xf32>
    %98 = tpu.matmul %97, %95, %cst_55 {dimension_numbers = #tpu.dot_dimension_numbers<[1], [0], [0], [1], [0, 0, 1, 1], [], []>} : vector<8x4xbf16>, vector<4x256xbf16>, vector<8x256xf32> -> vector<8x256xf32>
    %99 = arith.addf %93, %98 : vector<8x256xf32>
    %c0_56 = arith.constant 0 : index
    %c0_57 = arith.constant 0 : index
    %c34 = arith.constant 34 : index
    %100 = vector.load %arg1[%c0_56, %c0_57, %c34] : memref<1x4x290xbf16, #tpu.memory_space<vmem>>, vector<1x4x256xbf16>
    %101 = vector.shape_cast %100 : vector<1x4x256xbf16> to vector<4x256xbf16>
    %c8 = arith.constant 8 : index
    %c0_58 = arith.constant 0 : index
    %c0_59 = arith.constant 0 : index
    %102 = vector.load %arg2[%c8, %c0_58, %c0_59] : memref<9x8x4xbf16, #tpu.memory_space<vmem>>, vector<1x8x4xbf16>
    %103 = vector.shape_cast %102 : vector<1x8x4xbf16> to vector<8x4xbf16>
    %cst_60 = arith.constant dense<0.000000e+00> : vector<8x256xf32>
    %104 = tpu.matmul %103, %101, %cst_60 {dimension_numbers = #tpu.dot_dimension_numbers<[1], [0], [0], [1], [0, 0, 1, 1], [], []>} : vector<8x4xbf16>, vector<4x256xbf16>, vector<8x256xf32> -> vector<8x256xf32>
    %cst_61 = arith.constant 0.000000e+00 : f32
    %105 = vector.shape_cast %30 : vector<1x256xi1> to vector<1x256xi1>
    %106 = vector.broadcast %105 : vector<1x256xi1> to vector<8x256xi1>
    %107 = vector.broadcast %cst_61 : f32 to vector<8x256xf32>
    %108 = arith.select %106, %104, %107 : vector<8x256xi1>, vector<8x256xf32>
    %109 = arith.addf %99, %108 : vector<8x256xf32>
    %c0_62 = arith.constant 0 : index
    %c0_63 = arith.constant 0 : index
    %110 = vector.load %arg3[%c0_62, %c0_63] : memref<8x1xf32, #tpu.memory_space<vmem>>, vector<8x1xf32>
    %111 = vector.broadcast %110 : vector<8x1xf32> to vector<8x256xf32>
    %112 = arith.addf %109, %111 : vector<8x256xf32>
    %cst_64 = arith.constant 0.000000e+00 : f32
    %113 = vector.broadcast %cst_64 : f32 to vector<8x256xf32>
    %114 = arith.maximumf %112, %113 : vector<8x256xf32>
    %115 = vector.shape_cast %114 : vector<8x256xf32> to vector<1x8x256xf32>
    %c0_65 = arith.constant 0 : index
    %c0_66 = arith.constant 0 : index
    %c0_67 = arith.constant 0 : index
    %116 = vector.load %arg4[%c0_65, %c0_66, %c0_67] : memref<1x8x256xf32, #tpu.memory_space<vmem>>, vector<1x8x256xf32>
    tpu.vector_store %arg4[%c0_65, %c0_66, %c0_67], %115 {strides = array<i32>} : memref<1x8x256xf32, #tpu.memory_space<vmem>>, vector<1x8x256xf32>,
    return
  }
  func.func @transform_0(%arg0: i32) -> (i32, i32, i32) {
    %c0_i32 = arith.constant 0 : i32
    %c0_i32_0 = arith.constant 0 : i32
    %c0_i32_1 = arith.constant 0 : i32
    return %arg0, %c0_i32, %c0_i32_0 : i32, i32, i32
  }
  func.func @transform_1(%arg0: i32) -> (i32, i32, i32) {
    %c0_i32 = arith.constant 0 : i32
    %c0_i32_0 = arith.constant 0 : i32
    %c0_i32_1 = arith.constant 0 : i32
    %c0_i32_2 = arith.constant 0 : i32
    return %c0_i32, %c0_i32_0, %c0_i32_1 : i32, i32, i32
  }
  func.func @transform_2(%arg0: i32) -> (i32, i32) {
    %c0_i32 = arith.constant 0 : i32
    %c0_i32_0 = arith.constant 0 : i32
    %c0_i32_1 = arith.constant 0 : i32
    return %c0_i32, %c0_i32_0 : i32, i32
  }
  func.func @transform_3(%arg0: i32) -> (i32, i32, i32) {
    %c0_i32 = arith.constant 0 : i32
    %c0_i32_0 = arith.constant 0 : i32
    %c0_i32_1 = arith.constant 0 : i32
    return %arg0, %c0_i32, %c0_i32_0 : i32, i32, i32
  }
}

</mosaic_0001>

<llo_original>
// kernel: tpu_custom_call.1
$region0: #{tpu_custom_call.1}
  #allocation0 [shape = 'u32[]', space=smem, size = 0x4, offset = 0x4, fixed_abs, tag = 'smem constant byte address 0x4 - core index']
  #allocation1 [shape = 'u32[144,128]{1,0:T(1,128)}', space=vmem, size = 0x12000, scoped, tag = 'internal scratch']
  %s0 = inlined_call_operand.vmem [shape: bf16[2,4,290], index: 0, kind: input, shape index: {}]
  %s1 = inlined_call_operand.vmem [shape: bf16[9,8,4], index: 1, kind: input, shape index: {}]
  %s2 = inlined_call_operand.vmem [shape: f32[8,1], index: 2, kind: input, shape index: {}]
  %s3 = inlined_call_operand.hbm [shape: f32[2,8,256], index: 3, kind: output, shape index: {}]
  %s4 = sld [smem:[#allocation0]]
  $region45: #{tpu_custom_call.1} parent=0
    _
  %s6 = ssub.s32 1, %s4
  %s7 = scalar_select 0, %s6, %s4
  $region1: #{tpu_custom_call.1} parent=0
    #allocation2 [shape = 'u8[16384]{0}', space=vmem, size = 0x4000, scoped, tag = 'output window, operand 0']
    #allocation3 [shape = 's32[2]{0}', space=sflag, size = 0x8, scoped, tag = 'scoped memory for tpu_custom_call.1']
    %8 = vsyncpa [#allocation3], 0
    %s9 = scalar_lea.sflag [#allocation3], 1
    %10 = vsyncpa %s9, 0
    loop: start=0, step=1, limit=4
    $region2: #{tpu_custom_call.1} parent=1 // loop_pre_header
      _
    $region3: #{tpu_custom_call.1} parent=1 // loop_header
      %s12 = sphi 0, %s16
      %p13 = scmp.ge.s32.totalorder %s12, 4
      %s22 = sphi 0, %s24
      %s25 = sphi 0, %s22
      %s26 = sphi 0, %s25
      %s42 = sphi 0, %s26
      %s46 = sphi 0, %s46
      %s48 = sphi 0, %s46
      %s49 = sphi 0, %s48
      %s63 = sphi 0, %s49
      %s67 = sphi 0, %s67
      %s69 = sphi 0, %s67
      %s70 = sphi 0, %s69
      %s84 = sphi 0, %s70
      %s90 = sphi 0, %s92
      %s93 = sphi 0, %s90
      %s94 = sphi 0, %s93
      %s110 = sphi 0, %s94
    $region4: #{tpu_custom_call.1} parent=1 // loop_header_branch
      %15 = sbr.rel (%p13) target = $region8
    $region5: #{tpu_custom_call.1} parent=1 // loop_body
      %s17 = ssub.s32 %s12, 1
      %s18 = ssub.s32 %s12, 2
      %s19 = sadd.s32 %s12, 1
      %s20 = ssub.s32 %s12, %s19
      %p21 = scmp.eq.s32.totalorder %s20, 0
      %s23 = sadd.s32 %s22, 1
      %s24 = scalar_select %p21, %s22, %s23
      %p27 = pneg %p21
      %p28 = scmp.eq.s32.totalorder %s12, 1
      %p29 = por %p27, %p28
      %p30 = scmp.ne.s32.totalorder %s22, %s25
      %p31 = scmp.eq.s32.totalorder %s12, 0
      %p32 = por %p30, %p31
      %p33 = scmp.ne.s32.totalorder %s22, %s25
      %p34 = scmp.eq.s32.totalorder %s17, 1
      %p35 = por %p33, %p34
      %p36 = scmp.ne.s32.totalorder %s25, %s26
      %p37 = scmp.eq.s32.totalorder %s17, 0
      %p38 = por %p36, %p37
      %p39 = scmp.ne.s32.totalorder %s25, %s26
      %p40 = scmp.eq.s32.totalorder %s18, 1
      %p41 = por %p39, %p40
      %p43 = scmp.ne.s32.totalorder %s26, %s42
      %p44 = scmp.eq.s32.totalorder %s18, 0
      %p45 = por %p43, %p44
      %s47 = sadd.s32 %s46, 1
      %p50 = scmp.eq.s32.totalorder %s12, 1
      %p51 = scmp.ne.s32.totalorder %s46, %s48
      %p52 = scmp.eq.s32.totalorder %s12, 0
      %p53 = por %p51, %p52
      %p54 = scmp.ne.s32.totalorder %s46, %s48
      %p55 = scmp.eq.s32.totalorder %s17, 1
      %p56 = por %p54, %p55
      %p57 = scmp.ne.s32.totalorder %s48, %s49
      %p58 = scmp.eq.s32.totalorder %s17, 0
      %p59 = por %p57, %p58
      %p60 = scmp.ne.s32.totalorder %s48, %s49
      %p61 = scmp.eq.s32.totalorder %s18, 1
      %p62 = por %p60, %p61
      %p64 = scmp.ne.s32.totalorder %s49, %s63
      %p65 = scmp.eq.s32.totalorder %s18, 0
      %p66 = por %p64, %p65
      %s68 = sadd.s32 %s67, 1
      %p71 = scmp.eq.s32.totalorder %s12, 1
      %p72 = scmp.ne.s32.totalorder %s67, %s69
      %p73 = scmp.eq.s32.totalorder %s12, 0
      %p74 = por %p72, %p73
      %p75 = scmp.ne.s32.totalorder %s67, %s69
      %p76 = scmp.eq.s32.totalorder %s17, 1
      %p77 = por %p75, %p76
      %p78 = scmp.ne.s32.totalorder %s69, %s70
      %p79 = scmp.eq.s32.totalorder %s17, 0
      %p80 = por %p78, %p79
      %p81 = scmp.ne.s32.totalorder %s69, %s70
      %p82 = scmp.eq.s32.totalorder %s18, 1
      %p83 = por %p81, %p82
      %p85 = scmp.ne.s32.totalorder %s70, %s84
      %p86 = scmp.eq.s32.totalorder %s18, 0
      %p87 = por %p85, %p86
      %s88 = ssub.s32 %s12, %s19
      %p89 = scmp.eq.s32.totalorder %s88, 0
      %s91 = sadd.s32 %s90, 1
      %s92 = scalar_select %p89, %s90, %s91
      %p95 = pneg %p89
      %p96 = scmp.eq.s32.totalorder %s12, 1
      %p97 = por %p95, %p96
      %p98 = scmp.ne.s32.totalorder %s90, %s93
      %p99 = scmp.eq.s32.totalorder %s12, 0
      %p100 = por %p98, %p99
      %p101 = scmp.ne.s32.totalorder %s90, %s93
      %p102 = scmp.eq.s32.totalorder %s17, 1
      %p103 = por %p101, %p102
      %p104 = scmp.ne.s32.totalorder %s93, %s94
      %p105 = scmp.eq.s32.totalorder %s17, 0
      %p106 = por %p104, %p105
      %p107 = scmp.ne.s32.totalorder %s93, %s94
      %p108 = scmp.eq.s32.totalorder %s18, 1
      %p109 = por %p107, %p108
      %p111 = scmp.ne.s32.totalorder %s94, %s110
      %p112 = scmp.eq.s32.totalorder %s18, 0
      %p113 = por %p111, %p112
      %p114 = scmp.le.s32.totalorder 1, %s12
      %p115 = scmp.lt.s32.totalorder %s12, 3
      %p116 = pnand %p114, %p115
      %p117 = pneg %p116
      // Predicated region
      $region9: #{tpu_custom_call.1} parent=5 // pred_check
        _
      $region10: #{tpu_custom_call.1} parent=5 // pred_check_branch
        %119 = sbr.rel (%p116) target = $region12
      $region11: #{tpu_custom_call.1} parent=5 // pred_region
        %s120 = ssub.s32 %s12, 1
        // Predicated region
        $region13: #{tpu_custom_call.1} parent=11 // pred_check
          %p121 = pneg %p59
        $region14: #{tpu_custom_call.1} parent=11 // pred_check_branch
          %123 = sbr.rel (%p121) target = $region16
        $region15: #{tpu_custom_call.1} parent=11 // pred_region
          _
        $region16: #{tpu_custom_call.1} parent=11 // pred_fallthru
          _
        // Predicated region
        $region17: #{tpu_custom_call.1} parent=11 // pred_check
          %p124 = pneg %p80
        $region18: #{tpu_custom_call.1} parent=11 // pred_check_branch
          %126 = sbr.rel (%p124) target = $region20
        $region19: #{tpu_custom_call.1} parent=11 // pred_region
          _
        $region20: #{tpu_custom_call.1} parent=11 // pred_fallthru
          _
      $region12: #{tpu_custom_call.1} parent=5 // pred_fallthru
        _
      %p127 = scmp.lt.s32.totalorder %s12, 2
      // Predicated region
      $region21: #{tpu_custom_call.1} parent=5 // pred_check
        %p128 = pneg %p127
      $region22: #{tpu_custom_call.1} parent=5 // pred_check_branch
        %130 = sbr.rel (%p128) target = $region24
      $region23: #{tpu_custom_call.1} parent=5 // pred_region
        // Predicated region
        $region25: #{tpu_custom_call.1} parent=23 // pred_check
          %p131 = pneg %p32
        $region26: #{tpu_custom_call.1} parent=23 // pred_check_branch
          %133 = sbr.rel (%p131) target = $region28
        $region27: #{tpu_custom_call.1} parent=23 // pred_region
          %p134 = scmp.lt.s32.totalorder %s12, 1
          %s135 = scalar_select %p134, %s12, 1
          %s136 = smul.addr %s135, 3
          %s137 = smul.addr %s136, 2
          %s138 = scalar_lea.vmem %s0, %s137
        $region28: #{tpu_custom_call.1} parent=23 // pred_fallthru
          _
      $region24: #{tpu_custom_call.1} parent=5 // pred_fallthru
        _
      %p139 = scmp.le.s32.totalorder 1, %s12
      %p140 = scmp.lt.s32.totalorder %s12, 3
      %p141 = pnand %p139, %p140
      %p142 = pneg %p141
      // Predicated region
      $region29: #{tpu_custom_call.1} parent=5 // pred_check
        _
      $region30: #{tpu_custom_call.1} parent=5 // pred_check_branch
        %144 = sbr.rel (%p141) target = $region32
      $region31: #{tpu_custom_call.1} parent=5 // pred_region
        %s145 = ssub.s32 %s12, 1
        %p146 = scmp.lt.s32.totalorder %s17, 1
        %s147 = scalar_select %p146, %s17, 1
        %s148 = smul.addr %s147, 3
        %s149 = smul.addr %s148, 2
        %s150 = scalar_lea.vmem %s0, %s149
        %p151 = pneg %p38
        %p152 = pneg %p35
        %p153 = pneg %p59
        %p154 = pneg %p56
        %p155 = pneg %p80
        %p156 = pneg %p77
        %p157 = pneg %p106
        %p158 = pneg %p103
        %s159 = sand.u32 %s93, 1
        %s160 = scalar_lea.sflag [#allocation3], %s159
        %s161 = sand.u32 %s93, 1
        %s162 = smul.addr %s161, 16
        %s163 = scalar_lea.vmem [#allocation2], %s162
        %p164 = scmp.lt.s32.totalorder %s17, 1
        %s165 = scalar_select %p164, %s17, 1
        %s166 = smul.addr %s165, 3
        %s167 = smul.addr %s166, 2
        %s168 = scalar_lea.vmem %s0, %s167
        %v170 = vlaneseq
        %v171 = vand.u32 %v170, 127
        %v172 = vadd.s32 %v171, 128
        %vm173 = vcmp.lt.s32.totalorder %v171, 0
        %v174 = vsub.s32 0, %v171
        %v175 = vsel %vm173, %v174, %v171
        %v176 = vshrl.u32 %v175, 4
        %v177 = vand.u32 %v175, 15
        %v178 = vsub.s32 0, %v177
        %v179 = vsel %vm173, %v178, %v177
        %vm180 = vcmp.lt.s32.totalorder %v172, 0
        %v181 = vsub.s32 0, %v172
        %v182 = vsel %vm180, %v181, %v172
        %v183 = vshrl.u32 %v182, 4
        %v184 = vand.u32 %v182, 15
        %v185 = vsub.s32 0, %v184
        %v186 = vsel %vm180, %v185, %v184
        %vm187 = vcmp.ne.s32.totalorder %v179, 0
        %vm188 = vcmp.ne.s32.totalorder %v186, 0
        %vm189 = vcmp.lt.s32.totalorder %v179, 0
        %vm190 = vcmp.lt.s32.totalorder %v186, 0
        %vm191 = vmand %vm189, %vm187
        %vm192 = vmand %vm190, %vm188
        %v193 = vadd.s32 %v179, 16
        %v194 = vadd.s32 %v186, 16
        %v195 = vsel %vm191, %v193, %v179
        %v196 = vsel %vm192, %v194, %v186
        %v197 = vadd.s32 %v195, 4294967295
        %v198 = vadd.s32 %v196, 4294967295
        %vm199 = vcmp.ge.s32.totalorder %v197, 0
        %vm200 = vcmp.ge.s32.totalorder %v198, 0
        %vm201 = vcmp.lt.s32.totalorder %v197, 16
        %vm202 = vcmp.lt.s32.totalorder %v198, 16
        %vm203 = vmand %vm199, %vm201
        %vm204 = vmand %vm200, %vm202
        %v205 = vadd.s32 %v195, 1
        %v206 = vadd.s32 %v196, 1
        %vm207 = vcmp.ge.s32.totalorder %v205, 0
        %vm208 = vcmp.ge.s32.totalorder %v206, 0
        %vm209 = vcmp.lt.s32.totalorder %v205, 16
        %vm210 = vcmp.lt.s32.totalorder %v206, 16
        %vm211 = vmand %vm207, %vm209
        %vm212 = vmand %vm208, %vm210
        %v213 = vld [vmem:[%s168] sm:$0xf]
        %v214 = vld [vmem:[%s1] sm:$0xf]
        %v217 = vunpack.c.l.s4 1983009808
        %v218 = vunpack.c.0.s8 %v217
        %v219 = vlaneseq
        %v220 = vshrl.u32 %v219, 7
        %v221 = vsub.s32 %v218, %v220
        %v222 = vrot.slane %v213, %v221
        %v223 = vcombine.high %v222, %v222
        %vm224 = vcmask 31744
        %v226 = vsel %vm224, %v214, 0
        %vm228 = vcmask 1041408
        %v230 = vsel %vm228, %v222, 0
        %v233 = vsel %vm228, %v223, 0
        %235 = vmatprep.subr.bf16.mxu0 %v233
        %236 = vmatpush1.bf16.msra.mxu0 %v230
        %237 = vmatprep.subr.bf16.mxu0 0
        %238 = vmatpush1.bf16.msra.mxu0 0
        %239 = vmatprep.subr.bf16.mxu0 0
        %240 = vmatpush1.bf16.msra.mxu0 0
        %241 = vmatprep.subr.bf16.mxu0 0
        %242 = vmatpush1.bf16.msra.mxu0 0
        %243 = vmatprep.subr.bf16.mxu0 0
        %244 = vmatpush1.bf16.msra.mxu0 0
        %245 = vmatprep.subr.bf16.mxu0 0
        %246 = vmatpush1.bf16.msra.mxu0 0
        %247 = vmatprep.subr.bf16.mxu0 0
        %248 = vmatpush1.bf16.msra.mxu0 0
        %249 = vmatprep.subr.bf16.mxu0 0
        %250 = vmatpush1.bf16.msra.mxu0 0
        %251 = vmatprep.subr.bf16.mxu0 0
        %252 = vmatpush1.bf16.msra.mxu0 0
        %253 = vmatprep.subr.bf16.mxu0 0
        %254 = vmatpush1.bf16.msra.mxu0 0
        %255 = vmatprep.subr.bf16.mxu0 0
        %256 = vmatpush1.bf16.msra.mxu0 0
        %257 = vmatprep.subr.bf16.mxu0 0
        %258 = vmatpush1.bf16.msra.mxu0 0
        %259 = vmatprep.subr.bf16.mxu0 0
        %260 = vmatpush1.bf16.msra.mxu0 0
        %261 = vmatprep.subr.bf16.mxu0 0
        %262 = vmatpush1.bf16.msra.mxu0 0
        %263 = vmatprep.subr.bf16.mxu0 0
        %264 = vmatpush1.bf16.msra.mxu0 0
        %265 = vmatprep.subr.bf16.mxu0 0
        %266 = vmatpush1.bf16.msra.mxu0 0
        %267 = vmatprep.mubr.bf16.mxu0 0
        %268 = vmatmul.mubr.bf16.gmra.mrb[0].mxu0 %v226
        %v269 = vpop.f32.mrb[0].mxu0
        %v270 = vadd.f32 0.0, %v269
        %v271 = vpop.f32.mrb[0].mxu0
        %v272 = vadd.f32 0.0, %v271
        %v273 = vpop.f32.mrb[0].mxu0
        %v274 = vpop.f32.mrb[0].mxu0
        %275 = vdwg.mxu0
        %v276 = vsel %vm203, 1, 0
        %v277 = vsel %vm204, 1, 0
        %vm278 = vcmp.eq.s32.totalorder %v276, 1
        %vm279 = vcmp.eq.s32.totalorder %v277, 1
        %v280 = vsel %vm278, %v270, 0.0
        %v281 = vsel %vm279, %v272, 0.0
        %v282 = vadd.f32 %v280, 0.0
        %v283 = vadd.f32 %v281, 0.0
        %v284 = vld [vmem:[%s168] sm:$0x3f]
        %s285 = scalar_lea.vmem %s1, 4
        %v286 = vld [vmem:[%s285] sm:$0xf]
        %v288 = vcombine.high %v284, %v284
        %v290 = vunpack.c.l.s4 1983009808
        %v291 = vunpack.c.0.s8 %v290
        %v292 = vlaneseq
        %v293 = vshrl.u32 %v292, 7
        %v294 = vsub.s32 %v291, %v293
        %v295 = vrot.slane %v284, %v294
        %v297 = vunpack.c.l.s4 1983009808
        %v298 = vunpack.c.0.s8 %v297
        %v299 = vlaneseq
        %v300 = vshrl.u32 %v299, 7
        %v301 = vsub.s32 %v298, %v300
        %v302 = vrot.slane %v288, %v301
        %v303 = vcombine.high %v295, %v295
        %304 = vrot.lane.b32.xlu0 %v295, 127
        %v305 = vpop.permute.xlu0 %304
        %306 = vrot.lane.b32.xlu0 %v303, 127
        %v307 = vpop.permute.xlu0 %306
        %308 = vrot.lane.b32.xlu0 %v302, 127
        %v309 = vpop.permute.xlu0 %308
        %vm310 = vcmask 1039360
        %v311 = vsel %vm310, %v305, %v307
        %v312 = vsel %vm310, %v307, %v309
        %v314 = vsel %vm224, %v286, 0
        %v317 = vsel %vm228, %v311, 0
        %v320 = vsel %vm228, %v312, 0
        %322 = vmatprep.subr.bf16.mxu0 %v320
        %323 = vmatpush1.bf16.msra.mxu0 %v317
        %324 = vmatprep.subr.bf16.mxu0 0
        %325 = vmatpush1.bf16.msra.mxu0 0
        %326 = vmatprep.subr.bf16.mxu0 0
        %327 = vmatpush1.bf16.msra.mxu0 0
        %328 = vmatprep.subr.bf16.mxu0 0
        %329 = vmatpush1.bf16.msra.mxu0 0
        %330 = vmatprep.subr.bf16.mxu0 0
        %331 = vmatpush1.bf16.msra.mxu0 0
        %332 = vmatprep.subr.bf16.mxu0 0
        %333 = vmatpush1.bf16.msra.mxu0 0
        %334 = vmatprep.subr.bf16.mxu0 0
        %335 = vmatpush1.bf16.msra.mxu0 0
        %336 = vmatprep.subr.bf16.mxu0 0
        %337 = vmatpush1.bf16.msra.mxu0 0
        %338 = vmatprep.subr.bf16.mxu0 0
        %339 = vmatpush1.bf16.msra.mxu0 0
        %340 = vmatprep.subr.bf16.mxu0 0
        %341 = vmatpush1.bf16.msra.mxu0 0
        %342 = vmatprep.subr.bf16.mxu0 0
        %343 = vmatpush1.bf16.msra.mxu0 0
        %344 = vmatprep.subr.bf16.mxu0 0
        %345 = vmatpush1.bf16.msra.mxu0 0
        %346 = vmatprep.subr.bf16.mxu0 0
        %347 = vmatpush1.bf16.msra.mxu0 0
        %348 = vmatprep.subr.bf16.mxu0 0
        %349 = vmatpush1.bf16.msra.mxu0 0
        %350 = vmatprep.subr.bf16.mxu0 0
        %351 = vmatpush1.bf16.msra.mxu0 0
        %352 = vmatprep.subr.bf16.mxu0 0
        %353 = vmatpush1.bf16.msra.mxu0 0
        %354 = vmatprep.mubr.bf16.mxu0 0
        %355 = vmatmul.mubr.bf16.gmra.mrb[0].mxu0 %v314
        %v356 = vpop.f32.mrb[0].mxu0
        %v357 = vadd.f32 0.0, %v356
        %v358 = vpop.f32.mrb[0].mxu0
        %v359 = vadd.f32 0.0, %v358
        %v360 = vpop.f32.mrb[0].mxu0
        %v361 = vpop.f32.mrb[0].mxu0
        %362 = vdwg.mxu0
        %v363 = vadd.f32 %v282, %v357
        %v364 = vadd.f32 %v283, %v359
        %v365 = vld [vmem:[%s168] sm:$0x3f]
        %s366 = scalar_lea.vmem %s1, 8
        %v367 = vld [vmem:[%s366] sm:$0xf]
        %v369 = vcombine.high %v365, %v365
        %v371 = vunpack.c.l.s4 1983009808
        %v372 = vunpack.c.0.s8 %v371
        %v373 = vlaneseq
        %v374 = vshrl.u32 %v373, 7
        %v375 = vsub.s32 %v372, %v374
        %v376 = vrot.slane %v365, %v375
        %v378 = vunpack.c.l.s4 1983009808
        %v379 = vunpack.c.0.s8 %v378
        %v380 = vlaneseq
        %v381 = vshrl.u32 %v380, 7
        %v382 = vsub.s32 %v379, %v381
        %v383 = vrot.slane %v369, %v382
        %v384 = vcombine.high %v376, %v376
        %385 = vrot.lane.b32.xlu0 %v376, 126
        %v386 = vpop.permute.xlu0 %385
        %387 = vrot.lane.b32.xlu0 %v384, 126
        %v388 = vpop.permute.xlu0 %387
        %389 = vrot.lane.b32.xlu0 %v383, 126
        %v390 = vpop.permute.xlu0 %389
        %vm391 = vcmask 1031168
        %v392 = vsel %vm391, %v386, %v388
        %v393 = vsel %vm391, %v388, %v390
        %v395 = vsel %vm224, %v367, 0
        %v398 = vsel %vm228, %v392, 0
        %v401 = vsel %vm228, %v393, 0
        %403 = vmatprep.subr.bf16.mxu0 %v401
        %404 = vmatpush1.bf16.msra.mxu0 %v398
        %405 = vmatprep.subr.bf16.mxu0 0
        %406 = vmatpush1.bf16.msra.mxu0 0
        %407 = vmatprep.subr.bf16.mxu0 0
        %408 = vmatpush1.bf16.msra.mxu0 0
        %409 = vmatprep.subr.bf16.mxu0 0
        %410 = vmatpush1.bf16.msra.mxu0 0
        %411 = vmatprep.subr.bf16.mxu0 0
        %412 = vmatpush1.bf16.msra.mxu0 0
        %413 = vmatprep.subr.bf16.mxu0 0
        %414 = vmatpush1.bf16.msra.mxu0 0
        %415 = vmatprep.subr.bf16.mxu0 0
        %416 = vmatpush1.bf16.msra.mxu0 0
        %417 = vmatprep.subr.bf16.mxu0 0
        %418 = vmatpush1.bf16.msra.mxu0 0
        %419 = vmatprep.subr.bf16.mxu0 0
        %420 = vmatpush1.bf16.msra.mxu0 0
        %421 = vmatprep.subr.bf16.mxu0 0
        %422 = vmatpush1.bf16.msra.mxu0 0
        %423 = vmatprep.subr.bf16.mxu0 0
        %424 = vmatpush1.bf16.msra.mxu0 0
        %425 = vmatprep.subr.bf16.mxu0 0
        %426 = vmatpush1.bf16.msra.mxu0 0
        %427 = vmatprep.subr.bf16.mxu0 0
        %428 = vmatpush1.bf16.msra.mxu0 0
        %429 = vmatprep.subr.bf16.mxu0 0
        %430 = vmatpush1.bf16.msra.mxu0 0
        %431 = vmatprep.subr.bf16.mxu0 0
        %432 = vmatpush1.bf16.msra.mxu0 0
        %433 = vmatprep.subr.bf16.mxu0 0
        %434 = vmatpush1.bf16.msra.mxu0 0
        %435 = vmatprep.mubr.bf16.mxu0 0
        %436 = vmatmul.mubr.bf16.gmra.mrb[0].mxu0 %v395
        %v437 = vpop.f32.mrb[0].mxu0
        %v438 = vadd.f32 0.0, %v437
        %v439 = vpop.f32.mrb[0].mxu0
        %v440 = vadd.f32 0.0, %v439
        %v441 = vpop.f32.mrb[0].mxu0
        %v442 = vpop.f32.mrb[0].mxu0
        %443 = vdwg.mxu0
        %v444 = vsel %vm211, 1, 0
        %v445 = vsel %vm212, 1, 0
        %vm446 = vcmp.eq.s32.totalorder %v444, 1
        %vm447 = vcmp.eq.s32.totalorder %v445, 1
        %v448 = vsel %vm446, %v438, 0.0
        %v449 = vsel %vm447, %v440, 0.0
        %v450 = vadd.f32 %v363, %v448
        %v451 = vadd.f32 %v364, %v449
        %v452 = vld [vmem:[%s168] sm:$0x3f]
        %s453 = scalar_lea.vmem %s1, 12
        %v454 = vld [vmem:[%s453] sm:$0xf]
        %v456 = vcombine.high %v452, %v452
        %v458 = vunpack.c.l.s4 1983009808
        %v459 = vunpack.c.0.s8 %v458
        %v460 = vlaneseq
        %v461 = vshrl.u32 %v460, 7
        %v462 = vsub.s32 %v459, %v461
        %v463 = vrot.slane %v452, %v462
        %v465 = vunpack.c.l.s4 1983009808
        %v466 = vunpack.c.0.s8 %v465
        %v467 = vlaneseq
        %v468 = vshrl.u32 %v467, 7
        %v469 = vsub.s32 %v466, %v468
        %v470 = vrot.slane %v456, %v469
        %v471 = vcombine.high %v463, %v463
        %472 = vrot.lane.b32.xlu0 %v463, 112
        %v473 = vpop.permute.xlu0 %472
        %474 = vrot.lane.b32.xlu0 %v471, 112
        %v475 = vpop.permute.xlu0 %474
        %476 = vrot.lane.b32.xlu0 %v470, 112
        %v477 = vpop.permute.xlu0 %476
        %vm478 = vcmask 916480
        %v479 = vsel %vm478, %v473, %v475
        %v480 = vsel %vm478, %v475, %v477
        %v482 = vsel %vm224, %v454, 0
        %v485 = vsel %vm228, %v479, 0
        %v488 = vsel %vm228, %v480, 0
        %490 = vmatprep.subr.bf16.mxu0 %v488
        %491 = vmatpush1.bf16.msra.mxu0 %v485
        %492 = vmatprep.subr.bf16.mxu0 0
        %493 = vmatpush1.bf16.msra.mxu0 0
        %494 = vmatprep.subr.bf16.mxu0 0
        %495 = vmatpush1.bf16.msra.mxu0 0
        %496 = vmatprep.subr.bf16.mxu0 0
        %497 = vmatpush1.bf16.msra.mxu0 0
        %498 = vmatprep.subr.bf16.mxu0 0
        %499 = vmatpush1.bf16.msra.mxu0 0
        %500 = vmatprep.subr.bf16.mxu0 0
        %501 = vmatpush1.bf16.msra.mxu0 0
        %502 = vmatprep.subr.bf16.mxu0 0
        %503 = vmatpush1.bf16.msra.mxu0 0
        %504 = vmatprep.subr.bf16.mxu0 0
        %505 = vmatpush1.bf16.msra.mxu0 0
        %506 = vmatprep.subr.bf16.mxu0 0
        %507 = vmatpush1.bf16.msra.mxu0 0
        %508 = vmatprep.subr.bf16.mxu0 0
        %509 = vmatpush1.bf16.msra.mxu0 0
        %510 = vmatprep.subr.bf16.mxu0 0
        %511 = vmatpush1.bf16.msra.mxu0 0
        %512 = vmatprep.subr.bf16.mxu0 0
        %513 = vmatpush1.bf16.msra.mxu0 0
        %514 = vmatprep.subr.bf16.mxu0 0
        %515 = vmatpush1.bf16.msra.mxu0 0
        %516 = vmatprep.subr.bf16.mxu0 0
        %517 = vmatpush1.bf16.msra.mxu0 0
        %518 = vmatprep.subr.bf16.mxu0 0
        %519 = vmatpush1.bf16.msra.mxu0 0
        %520 = vmatprep.subr.bf16.mxu0 0
        %521 = vmatpush1.bf16.msra.mxu0 0
        %522 = vmatprep.mubr.bf16.mxu0 0
        %523 = vmatmul.mubr.bf16.gmra.mrb[0].mxu0 %v482
        %v524 = vpop.f32.mrb[0].mxu0
        %v525 = vadd.f32 0.0, %v524
        %v526 = vpop.f32.mrb[0].mxu0
        %v527 = vadd.f32 0.0, %v526
        %v528 = vpop.f32.mrb[0].mxu0
        %v529 = vpop.f32.mrb[0].mxu0
        %530 = vdwg.mxu0
        %v531 = vsel %vm278, %v525, 0.0
        %v532 = vsel %vm279, %v527, 0.0
        %v533 = vadd.f32 %v450, %v531
        %v534 = vadd.f32 %v451, %v532
        %v535 = vld [vmem:[%s168] sm:$0x3f]
        %s536 = scalar_lea.vmem %s1, 16
        %v537 = vld [vmem:[%s536] sm:$0xf]
        %v539 = vcombine.high %v535, %v535
        %v541 = vunpack.c.l.s4 1983009808
        %v542 = vunpack.c.0.s8 %v541
        %v543 = vlaneseq
        %v544 = vshrl.u32 %v543, 7
        %v545 = vsub.s32 %v542, %v544
        %v546 = vrot.slane %v535, %v545
        %v548 = vunpack.c.l.s4 1983009808
        %v549 = vunpack.c.0.s8 %v548
        %v550 = vlaneseq
        %v551 = vshrl.u32 %v550, 7
        %v552 = vsub.s32 %v549, %v551
        %v553 = vrot.slane %v539, %v552
        %v554 = vcombine.high %v546, %v546
        %555 = vrot.lane.b32.xlu0 %v546, 111
        %v556 = vpop.permute.xlu0 %555
        %557 = vrot.lane.b32.xlu0 %v554, 111
        %v558 = vpop.permute.xlu0 %557
        %559 = vrot.lane.b32.xlu0 %v553, 111
        %v560 = vpop.permute.xlu0 %559
        %vm561 = vcmask 908288
        %v562 = vsel %vm561, %v556, %v558
        %v563 = vsel %vm561, %v558, %v560
        %v565 = vsel %vm224, %v537, 0
        %v568 = vsel %vm228, %v562, 0
        %v571 = vsel %vm228, %v563, 0
        %573 = vmatprep.subr.bf16.mxu0 %v571
        %574 = vmatpush1.bf16.msra.mxu0 %v568
        %575 = vmatprep.subr.bf16.mxu0 0
        %576 = vmatpush1.bf16.msra.mxu0 0
        %577 = vmatprep.subr.bf16.mxu0 0
        %578 = vmatpush1.bf16.msra.mxu0 0
        %579 = vmatprep.subr.bf16.mxu0 0
        %580 = vmatpush1.bf16.msra.mxu0 0
        %581 = vmatprep.subr.bf16.mxu0 0
        %582 = vmatpush1.bf16.msra.mxu0 0
        %583 = vmatprep.subr.bf16.mxu0 0
        %584 = vmatpush1.bf16.msra.mxu0 0
        %585 = vmatprep.subr.bf16.mxu0 0
        %586 = vmatpush1.bf16.msra.mxu0 0
        %587 = vmatprep.subr.bf16.mxu0 0
        %588 = vmatpush1.bf16.msra.mxu0 0
        %589 = vmatprep.subr.bf16.mxu0 0
        %590 = vmatpush1.bf16.msra.mxu0 0
        %591 = vmatprep.subr.bf16.mxu0 0
        %592 = vmatpush1.bf16.msra.mxu0 0
        %593 = vmatprep.subr.bf16.mxu0 0
        %594 = vmatpush1.bf16.msra.mxu0 0
        %595 = vmatprep.subr.bf16.mxu0 0
        %596 = vmatpush1.bf16.msra.mxu0 0
        %597 = vmatprep.subr.bf16.mxu0 0
        %598 = vmatpush1.bf16.msra.mxu0 0
        %599 = vmatprep.subr.bf16.mxu0 0
        %600 = vmatpush1.bf16.msra.mxu0 0
        %601 = vmatprep.subr.bf16.mxu0 0
        %602 = vmatpush1.bf16.msra.mxu0 0
        %603 = vmatprep.subr.bf16.mxu0 0
        %604 = vmatpush1.bf16.msra.mxu0 0
        %605 = vmatprep.mubr.bf16.mxu0 0
        %606 = vmatmul.mubr.bf16.gmra.mrb[0].mxu0 %v565
        %v607 = vpop.f32.mrb[0].mxu0
        %v608 = vadd.f32 0.0, %v607
        %v609 = vpop.f32.mrb[0].mxu0
        %v610 = vadd.f32 0.0, %v609
        %v611 = vpop.f32.mrb[0].mxu0
        %v612 = vpop.f32.mrb[0].mxu0
        %613 = vdwg.mxu0
        %v614 = vadd.f32 %v533, %v608
        %v615 = vadd.f32 %v534, %v610
        %v616 = vld [vmem:[%s168] sm:$0x3f]
        %s617 = scalar_lea.vmem %s1, 20
        %v618 = vld [vmem:[%s617] sm:$0xf]
        %v620 = vcombine.high %v616, %v616
        %v622 = vunpack.c.l.s4 1983009808
        %v623 = vunpack.c.0.s8 %v622
        %v624 = vlaneseq
        %v625 = vshrl.u32 %v624, 7
        %v626 = vsub.s32 %v623, %v625
        %v627 = vrot.slane %v616, %v626
        %v629 = vunpack.c.l.s4 1983009808
        %v630 = vunpack.c.0.s8 %v629
        %v631 = vlaneseq
        %v632 = vshrl.u32 %v631, 7
        %v633 = vsub.s32 %v630, %v632
        %v634 = vrot.slane %v620, %v633
        %v635 = vcombine.high %v627, %v627
        %636 = vrot.lane.b32.xlu0 %v627, 110
        %v637 = vpop.permute.xlu0 %636
        %638 = vrot.lane.b32.xlu0 %v635, 110
        %v639 = vpop.permute.xlu0 %638
        %640 = vrot.lane.b32.xlu0 %v634, 110
        %v641 = vpop.permute.xlu0 %640
        %vm642 = vcmask 900096
        %v643 = vsel %vm642, %v637, %v639
        %v644 = vsel %vm642, %v639, %v641
        %v646 = vsel %vm224, %v618, 0
        %v649 = vsel %vm228, %v643, 0
        %v652 = vsel %vm228, %v644, 0
        %654 = vmatprep.subr.bf16.mxu0 %v652
        %655 = vmatpush1.bf16.msra.mxu0 %v649
        %656 = vmatprep.subr.bf16.mxu0 0
        %657 = vmatpush1.bf16.msra.mxu0 0
        %658 = vmatprep.subr.bf16.mxu0 0
        %659 = vmatpush1.bf16.msra.mxu0 0
        %660 = vmatprep.subr.bf16.mxu0 0
        %661 = vmatpush1.bf16.msra.mxu0 0
        %662 = vmatprep.subr.bf16.mxu0 0
        %663 = vmatpush1.bf16.msra.mxu0 0
        %664 = vmatprep.subr.bf16.mxu0 0
        %665 = vmatpush1.bf16.msra.mxu0 0
        %666 = vmatprep.subr.bf16.mxu0 0
        %667 = vmatpush1.bf16.msra.mxu0 0
        %668 = vmatprep.subr.bf16.mxu0 0
        %669 = vmatpush1.bf16.msra.mxu0 0
        %670 = vmatprep.subr.bf16.mxu0 0
        %671 = vmatpush1.bf16.msra.mxu0 0
        %672 = vmatprep.subr.bf16.mxu0 0
        %673 = vmatpush1.bf16.msra.mxu0 0
        %674 = vmatprep.subr.bf16.mxu0 0
        %675 = vmatpush1.bf16.msra.mxu0 0
        %676 = vmatprep.subr.bf16.mxu0 0
        %677 = vmatpush1.bf16.msra.mxu0 0
        %678 = vmatprep.subr.bf16.mxu0 0
        %679 = vmatpush1.bf16.msra.mxu0 0
        %680 = vmatprep.subr.bf16.mxu0 0
        %681 = vmatpush1.bf16.msra.mxu0 0
        %682 = vmatprep.subr.bf16.mxu0 0
        %683 = vmatpush1.bf16.msra.mxu0 0
        %684 = vmatprep.subr.bf16.mxu0 0
        %685 = vmatpush1.bf16.msra.mxu0 0
        %686 = vmatprep.mubr.bf16.mxu0 0
        %687 = vmatmul.mubr.bf16.gmra.mrb[0].mxu0 %v646
        %v688 = vpop.f32.mrb[0].mxu0
        %v689 = vadd.f32 0.0, %v688
        %v690 = vpop.f32.mrb[0].mxu0
        %v691 = vadd.f32 0.0, %v690
        %v692 = vpop.f32.mrb[0].mxu0
        %v693 = vpop.f32.mrb[0].mxu0
        %694 = vdwg.mxu0
        %v695 = vsel %vm446, %v689, 0.0
        %v696 = vsel %vm447, %v691, 0.0
        %v697 = vadd.f32 %v614, %v695
        %v698 = vadd.f32 %v615, %v696
        %v699 = vld [vmem:[%s168] sm:$0x3f]
        %s700 = scalar_lea.vmem %s1, 24
        %v701 = vld [vmem:[%s700] sm:$0xf]
        %v703 = vcombine.high %v699, %v699
        %v705 = vunpack.c.l.s4 1983009808
        %v706 = vunpack.c.0.s8 %v705
        %v707 = vlaneseq
        %v708 = vshrl.u32 %v707, 7
        %v709 = vsub.s32 %v706, %v708
        %v710 = vrot.slane %v699, %v709
        %v712 = vunpack.c.l.s4 1983009808
        %v713 = vunpack.c.0.s8 %v712
        %v714 = vlaneseq
        %v715 = vshrl.u32 %v714, 7
        %v716 = vsub.s32 %v713, %v715
        %v717 = vrot.slane %v703, %v716
        %v718 = vcombine.high %v710, %v710
        %719 = vrot.lane.b32.xlu0 %v710, 96
        %v720 = vpop.permute.xlu0 %719
        %721 = vrot.lane.b32.xlu0 %v718, 96
        %v722 = vpop.permute.xlu0 %721
        %723 = vrot.lane.b32.xlu0 %v717, 96
        %v724 = vpop.permute.xlu0 %723
        %vm725 = vcmask 785408
        %v726 = vsel %vm725, %v720, %v722
        %v727 = vsel %vm725, %v722, %v724
        %v729 = vsel %vm224, %v701, 0
        %v732 = vsel %vm228, %v726, 0
        %v735 = vsel %vm228, %v727, 0
        %737 = vmatprep.subr.bf16.mxu0 %v735
        %738 = vmatpush1.bf16.msra.mxu0 %v732
        %739 = vmatprep.subr.bf16.mxu0 0
        %740 = vmatpush1.bf16.msra.mxu0 0
        %741 = vmatprep.subr.bf16.mxu0 0
        %742 = vmatpush1.bf16.msra.mxu0 0
        %743 = vmatprep.subr.bf16.mxu0 0
        %744 = vmatpush1.bf16.msra.mxu0 0
        %745 = vmatprep.subr.bf16.mxu0 0
        %746 = vmatpush1.bf16.msra.mxu0 0
        %747 = vmatprep.subr.bf16.mxu0 0
        %748 = vmatpush1.bf16.msra.mxu0 0
        %749 = vmatprep.subr.bf16.mxu0 0
        %750 = vmatpush1.bf16.msra.mxu0 0
        %751 = vmatprep.subr.bf16.mxu0 0
        %752 = vmatpush1.bf16.msra.mxu0 0
        %753 = vmatprep.subr.bf16.mxu0 0
        %754 = vmatpush1.bf16.msra.mxu0 0
        %755 = vmatprep.subr.bf16.mxu0 0
        %756 = vmatpush1.bf16.msra.mxu0 0
        %757 = vmatprep.subr.bf16.mxu0 0
        %758 = vmatpush1.bf16.msra.mxu0 0
        %759 = vmatprep.subr.bf16.mxu0 0
        %760 = vmatpush1.bf16.msra.mxu0 0
        %761 = vmatprep.subr.bf16.mxu0 0
        %762 = vmatpush1.bf16.msra.mxu0 0
        %763 = vmatprep.subr.bf16.mxu0 0
        %764 = vmatpush1.bf16.msra.mxu0 0
        %765 = vmatprep.subr.bf16.mxu0 0
        %766 = vmatpush1.bf16.msra.mxu0 0
        %767 = vmatprep.subr.bf16.mxu0 0
        %768 = vmatpush1.bf16.msra.mxu0 0
        %769 = vmatprep.mubr.bf16.mxu0 0
        %770 = vmatmul.mubr.bf16.gmra.mrb[0].mxu0 %v729
        %v771 = vpop.f32.mrb[0].mxu0
        %v772 = vadd.f32 0.0, %v771
        %v773 = vpop.f32.mrb[0].mxu0
        %v774 = vadd.f32 0.0, %v773
        %v775 = vpop.f32.mrb[0].mxu0
        %v776 = vpop.f32.mrb[0].mxu0
        %777 = vdwg.mxu0
        %v778 = vsel %vm278, %v772, 0.0
        %v779 = vsel %vm279, %v774, 0.0
        %v780 = vadd.f32 %v697, %v778
        %v781 = vadd.f32 %v698, %v779
        %v782 = vld [vmem:[%s168] sm:$0x3f]
        %s783 = scalar_lea.vmem %s1, 28
        %v784 = vld [vmem:[%s783] sm:$0xf]
        %v786 = vcombine.high %v782, %v782
        %v788 = vunpack.c.l.s4 1983009808
        %v789 = vunpack.c.0.s8 %v788
        %v790 = vlaneseq
        %v791 = vshrl.u32 %v790, 7
        %v792 = vsub.s32 %v789, %v791
        %v793 = vrot.slane %v782, %v792
        %v795 = vunpack.c.l.s4 1983009808
        %v796 = vunpack.c.0.s8 %v795
        %v797 = vlaneseq
        %v798 = vshrl.u32 %v797, 7
        %v799 = vsub.s32 %v796, %v798
        %v800 = vrot.slane %v786, %v799
        %v801 = vcombine.high %v793, %v793
        %802 = vrot.lane.b32.xlu0 %v793, 95
        %v803 = vpop.permute.xlu0 %802
        %804 = vrot.lane.b32.xlu0 %v801, 95
        %v805 = vpop.permute.xlu0 %804
        %806 = vrot.lane.b32.xlu0 %v800, 95
        %v807 = vpop.permute.xlu0 %806
        %vm808 = vcmask 777216
        %v809 = vsel %vm808, %v803, %v805
        %v810 = vsel %vm808, %v805, %v807
        %v812 = vsel %vm224, %v784, 0
        %v815 = vsel %vm228, %v809, 0
        %v818 = vsel %vm228, %v810, 0
        %820 = vmatprep.subr.bf16.mxu0 %v818
        %821 = vmatpush1.bf16.msra.mxu0 %v815
        %822 = vmatprep.subr.bf16.mxu0 0
        %823 = vmatpush1.bf16.msra.mxu0 0
        %824 = vmatprep.subr.bf16.mxu0 0
        %825 = vmatpush1.bf16.msra.mxu0 0
        %826 = vmatprep.subr.bf16.mxu0 0
        %827 = vmatpush1.bf16.msra.mxu0 0
        %828 = vmatprep.subr.bf16.mxu0 0
        %829 = vmatpush1.bf16.msra.mxu0 0
        %830 = vmatprep.subr.bf16.mxu0 0
        %831 = vmatpush1.bf16.msra.mxu0 0
        %832 = vmatprep.subr.bf16.mxu0 0
        %833 = vmatpush1.bf16.msra.mxu0 0
        %834 = vmatprep.subr.bf16.mxu0 0
        %835 = vmatpush1.bf16.msra.mxu0 0
        %836 = vmatprep.subr.bf16.mxu0 0
        %837 = vmatpush1.bf16.msra.mxu0 0
        %838 = vmatprep.subr.bf16.mxu0 0
        %839 = vmatpush1.bf16.msra.mxu0 0
        %840 = vmatprep.subr.bf16.mxu0 0
        %841 = vmatpush1.bf16.msra.mxu0 0
        %842 = vmatprep.subr.bf16.mxu0 0
        %843 = vmatpush1.bf16.msra.mxu0 0
        %844 = vmatprep.subr.bf16.mxu0 0
        %845 = vmatpush1.bf16.msra.mxu0 0
        %846 = vmatprep.subr.bf16.mxu0 0
        %847 = vmatpush1.bf16.msra.mxu0 0
        %848 = vmatprep.subr.bf16.mxu0 0
        %849 = vmatpush1.bf16.msra.mxu0 0
        %850 = vmatprep.subr.bf16.mxu0 0
        %851 = vmatpush1.bf16.msra.mxu0 0
        %852 = vmatprep.mubr.bf16.mxu0 0
        %853 = vmatmul.mubr.bf16.gmra.mrb[0].mxu0 %v812
        %v854 = vpop.f32.mrb[0].mxu0
        %v855 = vadd.f32 0.0, %v854
        %v856 = vpop.f32.mrb[0].mxu0
        %v857 = vadd.f32 0.0, %v856
        %v858 = vpop.f32.mrb[0].mxu0
        %v859 = vpop.f32.mrb[0].mxu0
        %860 = vdwg.mxu0
        %v861 = vadd.f32 %v780, %v855
        %v862 = vadd.f32 %v781, %v857
        %v863 = vld [vmem:[%s168] sm:$0x3f]
        %s864 = scalar_lea.vmem %s1, 32
        %v865 = vld [vmem:[%s864] sm:$0xf]
        %v867 = vcombine.high %v863, %v863
        %v869 = vunpack.c.l.s4 1983009808
        %v870 = vunpack.c.0.s8 %v869
        %v871 = vlaneseq
        %v872 = vshrl.u32 %v871, 7
        %v873 = vsub.s32 %v870, %v872
        %v874 = vrot.slane %v863, %v873
        %v876 = vunpack.c.l.s4 1983009808
        %v877 = vunpack.c.0.s8 %v876
        %v878 = vlaneseq
        %v879 = vshrl.u32 %v878, 7
        %v880 = vsub.s32 %v877, %v879
        %v881 = vrot.slane %v867, %v880
        %v882 = vcombine.high %v874, %v874
        %883 = vrot.lane.b32.xlu0 %v874, 94
        %v884 = vpop.permute.xlu0 %883
        %885 = vrot.lane.b32.xlu0 %v882, 94
        %v886 = vpop.permute.xlu0 %885
        %887 = vrot.lane.b32.xlu0 %v881, 94
        %v888 = vpop.permute.xlu0 %887
        %vm889 = vcmask 769024
        %v890 = vsel %vm889, %v884, %v886
        %v891 = vsel %vm889, %v886, %v888
        %v893 = vsel %vm224, %v865, 0
        %v896 = vsel %vm228, %v890, 0
        %v899 = vsel %vm228, %v891, 0
        %901 = vmatprep.subr.bf16.mxu0 %v899
        %902 = vmatpush1.bf16.msra.mxu0 %v896
        %903 = vmatprep.subr.bf16.mxu0 0
        %904 = vmatpush1.bf16.msra.mxu0 0
        %905 = vmatprep.subr.bf16.mxu0 0
        %906 = vmatpush1.bf16.msra.mxu0 0
        %907 = vmatprep.subr.bf16.mxu0 0
        %908 = vmatpush1.bf16.msra.mxu0 0
        %909 = vmatprep.subr.bf16.mxu0 0
        %910 = vmatpush1.bf16.msra.mxu0 0
        %911 = vmatprep.subr.bf16.mxu0 0
        %912 = vmatpush1.bf16.msra.mxu0 0
        %913 = vmatprep.subr.bf16.mxu0 0
        %914 = vmatpush1.bf16.msra.mxu0 0
        %915 = vmatprep.subr.bf16.mxu0 0
        %916 = vmatpush1.bf16.msra.mxu0 0
        %917 = vmatprep.subr.bf16.mxu0 0
        %918 = vmatpush1.bf16.msra.mxu0 0
        %919 = vmatprep.subr.bf16.mxu0 0
        %920 = vmatpush1.bf16.msra.mxu0 0
        %921 = vmatprep.subr.bf16.mxu0 0
        %922 = vmatpush1.bf16.msra.mxu0 0
        %923 = vmatprep.subr.bf16.mxu0 0
        %924 = vmatpush1.bf16.msra.mxu0 0
        %925 = vmatprep.subr.bf16.mxu0 0
        %926 = vmatpush1.bf16.msra.mxu0 0
        %927 = vmatprep.subr.bf16.mxu0 0
        %928 = vmatpush1.bf16.msra.mxu0 0
        %929 = vmatprep.subr.bf16.mxu0 0
        %930 = vmatpush1.bf16.msra.mxu0 0
        %931 = vmatprep.subr.bf16.mxu0 0
        %932 = vmatpush1.bf16.msra.mxu0 0
        %933 = vmatprep.mubr.bf16.mxu0 0
        %934 = vmatmul.mubr.bf16.gmra.mrb[0].mxu0 %v893
        %v935 = vpop.f32.mrb[0].mxu0
        %v936 = vadd.f32 0.0, %v935
        %v937 = vpop.f32.mrb[0].mxu0
        %v938 = vadd.f32 0.0, %v937
        %v939 = vpop.f32.mrb[0].mxu0
        %v940 = vpop.f32.mrb[0].mxu0
        %941 = vdwg.mxu0
        %v942 = vsel %vm446, %v936, 0.0
        %v943 = vsel %vm447, %v938, 0.0
        %v944 = vadd.f32 %v861, %v942
        %v945 = vadd.f32 %v862, %v943
        %v946 = vld [vmem:[%s2] sm:$0xff]
        %948 = vset.pattern.permute.xlu0 0
        %949 = vperm.xlu0 %948, %v946
        %v950 = vpop.permute.xlu0 %949
        %v952 = vadd.f32 %v944, %v950
        %v953 = vadd.f32 %v945, %v950
        %v954 = vmax.f32 %v952, 0.0
        %v955 = vmax.f32 %v953, 0.0
        %956 = vst [vmem:[%s163] sm:$0xff] %v954
        %957 = vst [vmem:[%s163 + $0x8] sm:$0xff] %v955
        %s958 = sand.u32 %s93, 1
        %s959 = scalar_lea.sflag [#allocation3], %s958
        %s960 = sand.u32 %s93, 1
        %s961 = smul.addr %s960, 16
        %s962 = scalar_lea.vmem [#allocation2], %s961
        // Predicated region
        $region33: #{tpu_custom_call.1} parent=31 // pred_check
          %p963 = pneg %p103
        $region34: #{tpu_custom_call.1} parent=31 // pred_check_branch
          %965 = sbr.rel (%p963) target = $region36
        $region35: #{tpu_custom_call.1} parent=31 // pred_region
          %s967 = ssub.s32 256, 256
          %968 = vsyncadd %s959, %s967
          %s969 = smul.addr %s17, 2
          %s970 = smul.addr %s969, 128
          %s971 = scalar_lea.hbm %s3, %s970
          %s973 = sshll.u32 %s962, 4
          %s974 = int_to_ptr.vmem [resolvable:$true] %s973
          %976 = dma.vmem_to_hbm [thread:$0]  %s974, 256, %s971, %s959
        $region36: #{tpu_custom_call.1} parent=31 // pred_fallthru
          _
      $region32: #{tpu_custom_call.1} parent=5 // pred_fallthru
        _
      %p977 = scmp.le.s32.totalorder 2, %s12
      // Predicated region
      $region37: #{tpu_custom_call.1} parent=5 // pred_check
        %p978 = pneg %p977
      $region38: #{tpu_custom_call.1} parent=5 // pred_check_branch
        %980 = sbr.rel (%p978) target = $region40
      $region39: #{tpu_custom_call.1} parent=5 // pred_region
        %s981 = ssub.s32 %s12, 2
        // Predicated region
        $region41: #{tpu_custom_call.1} parent=39 // pred_check
          %p982 = pneg %p109
        $region42: #{tpu_custom_call.1} parent=39 // pred_check_branch
          %984 = sbr.rel (%p982) target = $region44
        $region43: #{tpu_custom_call.1} parent=39 // pred_region
          %s985 = sand.u32 %s94, 1
          %s986 = scalar_lea.sflag [#allocation3], %s985
          %s987 = sand.u32 %s94, 1
          %s988 = smul.addr %s987, 16
          %s989 = scalar_lea.vmem [#allocation2], %s988
          %990 = dma.done %s986, 256
        $region44: #{tpu_custom_call.1} parent=39 // pred_fallthru
          _
      $region40: #{tpu_custom_call.1} parent=5 // pred_fallthru
        _
    $region6: #{tpu_custom_call.1} parent=1 // loop_footer
      %s16 = sadd.s32 1, %s12
    $region7: #{tpu_custom_call.1} parent=1 // loop_footer_branch
      %11 = sbr.rel target = $region3
    $region8: #{tpu_custom_call.1} parent=1 // loop_exit
      _
    %991 = vsyncpa [#allocation3], 1
    %s992 = scalar_lea.sflag [#allocation3], 1
    %993 = vsyncpa %s992, 1

</llo_original>
